<compile_context>
chip_gen: v5e
topology: v5e:2x2
jax: 0.10.0
libtpu: 0.0.40
codegen_flags: <defaults>
</compile_context>

<pallas_src>
import functools

import jax
import jax.numpy as jnp
from jax.experimental import pallas as pl
from jax.experimental.pallas import tpu as pltpu

_LANE = 128      # lane width: feature dims padded to a multiple of this
_SUBLANE = 8     # sublane width: batch padded to a multiple of this


def _round_up(x, m):
    return (x + m - 1) // m * m


# ----------------------------- Pallas kernel --------------------------------

def _vae_fused_kernel(x_ref, w_ref, b_ref, cls_ref, rec_ref, *,
                      pad_dims, n_enc, n_dec, bottleneck_dim, pad_bot):
    """Whole VAE forward (encoder + decoder) for one batch tile.

    x_ref   : (TB, pad_in)           f32 activations
    w_ref   : (L, max_in, max_out)   bf16 packed, zero-padded weights
    b_ref   : (L, 1, max_out)        f32  packed, zero-padded biases
    cls_ref : (TB, pad_bot)          f32 softmax bottleneck (padded lanes = 0)
    rec_ref : (TB, pad_out)          f32 reconstruction     (padded lanes = 0)

    Zero-padded weight rows/cols and bias lanes keep padded activation lanes
    exactly 0 through every tanh layer; the bottleneck softmax masks padded
    lanes so real lanes still sum to 1.
    """
    n_layers = n_enc + n_dec
    h = x_ref[...]                                  # f32

    for li in range(n_layers):
        pi, po = pad_dims[li]
        w = w_ref[li, :pi, :po]                     # bf16 (MXU operand)
        b = b_ref[li, :, :po]                       # f32  (1, po)
        y = jnp.dot(h.astype(jnp.bfloat16), w,
                    preferred_element_type=jnp.float32) + b

        if li == n_enc - 1:
            # --- bottleneck softmax over the real lanes only ----------------
            if bottleneck_dim < pad_bot:
                lane = jax.lax.broadcasted_iota(jnp.int32, y.shape, 1)
                valid = lane < bottleneck_dim
                y = jnp.where(valid, y, jnp.float32(-1e30))
            m = jnp.max(y, axis=-1, keepdims=True)
            e = jnp.exp(y - m)                      # padded lanes underflow to 0
            if bottleneck_dim < pad_bot:
                e = jnp.where(valid, e, jnp.float32(0.0))
            denom = jnp.sum(e, axis=-1, keepdims=True)
            h = e * pl.reciprocal(denom, approx=True)
            cls_ref[...] = h
        elif li == n_layers - 1:
            h = y                                   # final decoder layer: linear
        else:
            h = jnp.tanh(y)                         # hidden layers: tanh (f32)

    rec_ref[...] = h


# --------------------------- one-time param packing --------------------------

def prepare_vae_params(enc_params, dec_params):
    """Pack + pad + bf16-cast every layer ONCE (init time, not per call).

    Returns (wbuf, bbuf, meta):
      wbuf : (L, max_in, max_out) bf16, zero-padded
      bbuf : (L, 1, max_out)      f32,  zero-padded
    """
    params = list(enc_params) + list(dec_params)
    pad_dims = tuple((_round_up(w.shape[0], _LANE), _round_up(w.shape[1], _LANE))
                     for w, _ in params)
    max_in = max(pi for pi, _ in pad_dims)
    max_out = max(po for _, po in pad_dims)
    L = len(params)

    wbuf = jnp.zeros((L, max_in, max_out), jnp.bfloat16)
    bbuf = jnp.zeros((L, 1, max_out), jnp.float32)
    for li, (w, b) in enumerate(params):
        fi, fo = w.shape
        wbuf = wbuf.at[li, :fi, :fo].set(w.astype(jnp.bfloat16))
        bbuf = bbuf.at[li, :, :fo].set(b.astype(jnp.float32).reshape(1, fo))

    meta = dict(
        n_enc=len(enc_params),
        n_dec=len(dec_params),
        pad_dims=pad_dims,
        bottleneck_dim=enc_params[-1][0].shape[1],
    )
    return wbuf, bbuf, meta


def pad_input(x, pad_batch, pad_in):
    """One-time input padding; no-op (returns x) when already aligned + f32."""
    if x.dtype != jnp.float32:
        x = x.astype(jnp.float32)
    b, d = x.shape
    if b == pad_batch and d == pad_in:
        return x
    return jnp.pad(x, ((0, pad_batch - b), (0, pad_in - d)))


# ------------------------------- forward factory ------------------------------

def make_vae_forward(meta, batch, *, batch_tile=None):
    """Build the jitted fused forward.  The traced graph is ONLY the pallas_call.

    Returns (forward, pads) where
      forward(x_padded, wbuf, bbuf) -> (cls_padded, rec_padded)   [lane-dense]
      pads = dict(pad_batch, pad_in, pad_bot, pad_out)
    """
    n_enc, n_dec = meta["n_enc"], meta["n_dec"]
    pad_dims = meta["pad_dims"]
    bottleneck_dim = meta["bottleneck_dim"]
    L = n_enc + n_dec
    max_in = max(pi for pi, _ in pad_dims)
    max_out = max(po for _, po in pad_dims)
    pad_in = pad_dims[0][0]
    pad_bot = pad_dims[n_enc - 1][1]
    pad_out = pad_dims[-1][1]

    # Batch tiling: one VMEM-resident tile at small batch; at large batch the
    # grid shards tiles across TensorCores (v7x) / bounds the VMEM footprint.
    pad_batch = _round_up(batch, _SUBLANE)
    if batch_tile is None:
        batch_tile = 512
    tb = _round_up(min(batch_tile, pad_batch), _SUBLANE)
    pad_batch = _round_up(pad_batch, tb)
    grid = (pad_batch // tb,)

    kernel = functools.partial(
        _vae_fused_kernel,
        pad_dims=pad_dims, n_enc=n_enc, n_dec=n_dec,
        bottleneck_dim=bottleneck_dim, pad_bot=pad_bot)

    flops = 2 * pad_batch * sum(pi * po for pi, po in pad_dims)
    tanh_elems = pad_batch * sum(po for li, (pi, po) in enumerate(pad_dims)
                                 if li not in (n_enc - 1, L - 1))
    transcendentals = tanh_elems + pad_batch * pad_bot          # tanh + exp
    bytes_accessed = (pad_batch * pad_in * 4            # x
                      + L * max_in * max_out * 2        # bf16 weights
                      + L * max_out * 4                 # f32 biases
                      + pad_batch * pad_bot * 4         # cls out
                      + pad_batch * pad_out * 4)        # rec out

    fused = pl.pallas_call(
        kernel,
        out_shape=(jax.ShapeDtypeStruct((pad_batch, pad_bot), jnp.float32),
                   jax.ShapeDtypeStruct((pad_batch, pad_out), jnp.float32)),
        grid=grid,
        in_specs=[
            pl.BlockSpec((tb, pad_in), lambda i: (i, 0)),
            # constant block index -> weights/biases stay VMEM-resident
            pl.BlockSpec((L, max_in, max_out), lambda i: (0, 0, 0)),
            pl.BlockSpec((L, 1, max_out), lambda i: (0, 0, 0)),
        ],
        out_specs=(
            pl.BlockSpec((tb, pad_bot), lambda i: (i, 0)),
            pl.BlockSpec((tb, pad_out), lambda i: (i, 0)),
        ),
        compiler_params=pltpu.CompilerParams(
            dimension_semantics=("parallel",)),
        cost_estimate=pl.CostEstimate(
            flops=flops, transcendentals=transcendentals,
            bytes_accessed=bytes_accessed),
    )

    def forward(x_padded, wbuf, bbuf):
        # Lane-dense padded outputs; no slicing inside the jitted path.
        return fused(x_padded, wbuf, bbuf)

    pads = dict(pad_batch=pad_batch, pad_in=pad_in,
                pad_bot=pad_bot, pad_out=pad_out)
    return jax.jit(forward), pads


# ------------------------------ MLP construction ------------------------------

def mlp_layer_dims(in_dim, out_dim, factor):
    """Geometric interpolation of layer widths by `factor` (mirrors the
    recursive |layers| ~ log_factor(input_dim) construction)."""
    dims = [in_dim]
    d = in_dim
    if in_dim > out_dim:
        while d // factor > out_dim:
            d = d // factor
            dims.append(d)
    else:
        while d * factor < out_dim:
            d = d * factor
            dims.append(d)
    dims.append(out_dim)
    return dims


def init_mlp_params(key, dims):
    """Deterministic Xavier-ish init for each Linear layer."""
    params = []
    for i in range(len(dims) - 1):
        key, wk, bk = jax.random.split(key, 3)
        fan_in, fan_out = dims[i], dims[i + 1]
        scale = 1.0 / jnp.sqrt(jnp.float32(fan_in))
        w = jax.random.uniform(wk, (fan_in, fan_out), jnp.float32, -scale, scale)
        b = jax.random.uniform(bk, (1, fan_out), jnp.float32, -scale, scale)
        params.append((w, b))
    return params


# --------------------------------- main ---------------------------------------

if __name__ == "__main__":
    BATCH = 8
    INPUT_DIM = 128     # flattened input features
    OUTPUT_DIM = 8      # bottleneck / class dim
    FACTOR = 10         # CONFIG['factor']

    key = jax.random.PRNGKey(0)
    key, xk, ek, dk = jax.random.split(key, 4)

    x = jax.random.normal(xk, (BATCH, INPUT_DIM), jnp.float32)

    enc_dims = mlp_layer_dims(INPUT_DIM, OUTPUT_DIM, FACTOR)   # [128, 12, 8]
    dec_dims = mlp_layer_dims(OUTPUT_DIM, INPUT_DIM, FACTOR)   # [8, 80, 128]

    enc_params = init_mlp_params(ek, enc_dims)
    dec_params = init_mlp_params(dk, dec_dims)

    # ---- init-time packing (NOT in the per-call path) -----------------------
    wbuf, bbuf, meta = prepare_vae_params(enc_params, dec_params)
    forward, pads = make_vae_forward(meta, BATCH)

    # One-time input prep (no-op here: BATCH % 8 == 0, INPUT_DIM % 128 == 0).
    x_p = pad_input(x, pads["pad_batch"], pads["pad_in"])

    cls_p, rec_p = forward(x_p, wbuf, bbuf)
    jax.block_until_ready((cls_p, rec_p))

    # Verification-only slicing, deliberately OUTSIDE the jitted forward.
    class_pred = cls_p[:BATCH, :OUTPUT_DIM]
    recon = rec_p[:BATCH, :INPUT_DIM]

    assert class_pred.shape == (BATCH, OUTPUT_DIM)
    assert recon.shape == (BATCH, INPUT_DIM)
    # Softmax rows sum to ~1 (approx reciprocal allowed) and padded lanes are 0.
    assert bool(jnp.all(jnp.abs(jnp.sum(class_pred, axis=-1) - 1.0) < 5e-3))
    assert bool(jnp.all(cls_p[:, OUTPUT_DIM:] == 0.0))

    # Pure-JAX reference mirroring the kernel's bf16 MXU operands (f32 accumulate).
    def ref_forward(xr, enc_p, dec_p):
        def run(h, params, classify):
            for i, (w, b) in enumerate(params):
                wq = w.astype(jnp.bfloat16).astype(jnp.float32)
                hq = h.astype(jnp.bfloat16).astype(jnp.float32)
                h = hq @ wq + b.reshape(1, -1)
                if i < len(params) - 1:
                    h = jnp.tanh(h)
                elif classify:
                    h = jax.nn.softmax(h, axis=-1)
            return h
        cp = run(xr, enc_p, True)
        return cp, run(cp, dec_p, False)

    ref_cp, ref_rec = ref_forward(x, enc_params, dec_params)
    assert bool(jnp.allclose(class_pred, ref_cp, atol=1e-2, rtol=1e-2))
    assert bool(jnp.allclose(recon, ref_rec, atol=1e-2, rtol=1e-2))

    print("KERNEL_OK")
</pallas_src>

<mosaic_0001>
module attributes {stable_mosaic.version = 11 : i64} {
  func.func @_vae_fused_kernel(%arg0: i32, %arg1: memref<8x128xf32, #tpu.memory_space<vmem>>, %arg2: memref<4x128x128xbf16, #tpu.memory_space<vmem>>, %arg3: memref<4x1x128xf32, #tpu.memory_space<vmem>>, %arg4: memref<8x128xf32, #tpu.memory_space<vmem>>, %arg5: memref<8x128xf32, #tpu.memory_space<vmem>>) attributes {dimension_semantics = [#tpu.dimension_semantics<parallel>], iteration_bounds = array<i64: 1>, scalar_prefetch = 0 : i64, scratch_operands = 0 : i64, tpu.core_type = #tpu.core_type<tc>, window_params = [{transform_indices = @transform_0, window_bounds = array<i64: 8, 128>}, {pipeline_mode = #tpu.pipeline_mode<synchronous>, transform_indices = @transform_1, window_bounds = array<i64: 4, 128, 128>}, {pipeline_mode = #tpu.pipeline_mode<synchronous>, transform_indices = @transform_2, window_bounds = array<i64: 4, 1, 128>}, {transform_indices = @transform_3, window_bounds = array<i64: 8, 128>}, {transform_indices = @transform_4, window_bounds = array<i64: 8, 128>}]} {
    %c0 = arith.constant 0 : index
    %c0_0 = arith.constant 0 : index
    %0 = vector.load %arg1[%c0, %c0_0] : memref<8x128xf32, #tpu.memory_space<vmem>>, vector<8x128xf32>
    %c0_1 = arith.constant 0 : index
    %c0_2 = arith.constant 0 : index
    %c0_3 = arith.constant 0 : index
    %1 = vector.load %arg2[%c0_1, %c0_2, %c0_3] : memref<4x128x128xbf16, #tpu.memory_space<vmem>>, vector<1x128x128xbf16>
    %2 = vector.shape_cast %1 : vector<1x128x128xbf16> to vector<128x128xbf16>
    %c0_4 = arith.constant 0 : index
    %c0_5 = arith.constant 0 : index
    %c0_6 = arith.constant 0 : index
    %3 = vector.load %arg3[%c0_4, %c0_5, %c0_6] : memref<4x1x128xf32, #tpu.memory_space<vmem>>, vector<1x1x128xf32>
    %4 = vector.shape_cast %3 : vector<1x1x128xf32> to vector<1x128xf32>
    %5 = arith.truncf %0 : vector<8x128xf32> to vector<8x128xbf16>
    %cst = arith.constant dense<0.000000e+00> : vector<8x128xf32>
    %6 = tpu.matmul %5, %2, %cst {dimension_numbers = #tpu.dot_dimension_numbers<[1], [0], [0], [1], [0, 0, 1, 1], [], []>} : vector<8x128xbf16>, vector<128x128xbf16>, vector<8x128xf32> -> vector<8x128xf32>
    %7 = vector.broadcast %4 : vector<1x128xf32> to vector<8x128xf32>
    %8 = arith.addf %6, %7 : vector<8x128xf32>
    %9 = math.tanh %8 : vector<8x128xf32>
    %c1 = arith.constant 1 : index
    %c0_7 = arith.constant 0 : index
    %c0_8 = arith.constant 0 : index
    %10 = vector.load %arg2[%c1, %c0_7, %c0_8] : memref<4x128x128xbf16, #tpu.memory_space<vmem>>, vector<1x128x128xbf16>
    %11 = vector.shape_cast %10 : vector<1x128x128xbf16> to vector<128x128xbf16>
    %c1_9 = arith.constant 1 : index
    %c0_10 = arith.constant 0 : index
    %c0_11 = arith.constant 0 : index
    %12 = vector.load %arg3[%c1_9, %c0_10, %c0_11] : memref<4x1x128xf32, #tpu.memory_space<vmem>>, vector<1x1x128xf32>
    %13 = vector.shape_cast %12 : vector<1x1x128xf32> to vector<1x128xf32>
    %14 = arith.truncf %9 : vector<8x128xf32> to vector<8x128xbf16>
    %cst_12 = arith.constant dense<0.000000e+00> : vector<8x128xf32>
    %15 = tpu.matmul %14, %11, %cst_12 {dimension_numbers = #tpu.dot_dimension_numbers<[1], [0], [0], [1], [0, 0, 1, 1], [], []>} : vector<8x128xbf16>, vector<128x128xbf16>, vector<8x128xf32> -> vector<8x128xf32>
    %16 = vector.broadcast %13 : vector<1x128xf32> to vector<8x128xf32>
    %17 = arith.addf %15, %16 : vector<8x128xf32>
    %18 = tpu.iota {dimensions = array<i32: 1>} : vector<8x128xi32>
    %c8_i32 = arith.constant 8 : i32
    %19 = vector.broadcast %c8_i32 : i32 to vector<8x128xi32>
    %20 = arith.cmpi slt, %18, %19 : vector<8x128xi32>
    %cst_13 = arith.constant -1.000000e+30 : f32
    %21 = vector.broadcast %cst_13 : f32 to vector<8x128xf32>
    %22 = arith.select %20, %17, %21 : vector<8x128xi1>, vector<8x128xf32>
    %cst_14 = arith.constant dense<0xFF800000> : vector<8xf32>
    %23 = vector.multi_reduction <maximumf>, %22, %cst_14 [1] : vector<8x128xf32> to vector<8xf32>
    %24 = vector.shape_cast %23 : vector<8xf32> to vector<8x1xf32>
    %25 = vector.broadcast %24 : vector<8x1xf32> to vector<8x128xf32>
    %26 = arith.subf %22, %25 : vector<8x128xf32>
    %27 = math.exp %26 : vector<8x128xf32>
    %cst_15 = arith.constant 0.000000e+00 : f32
    %28 = vector.broadcast %cst_15 : f32 to vector<8x128xf32>
    %29 = arith.select %20, %27, %28 : vector<8x128xi1>, vector<8x128xf32>
    %cst_16 = arith.constant dense<0.000000e+00> : vector<8xf32>
    %30 = vector.multi_reduction <add>, %29, %cst_16 [1] : vector<8x128xf32> to vector<8xf32>
    %31 = vector.shape_cast %30 : vector<8xf32> to vector<8x1xf32>
    %32 = tpu.reciprocal %31 {approx = true} : vector<8x1xf32> -> vector<8x1xf32>
    %33 = vector.broadcast %32 : vector<8x1xf32> to vector<8x128xf32>
    %34 = arith.mulf %29, %33 : vector<8x128xf32>
    %c0_17 = arith.constant 0 : index
    %c0_18 = arith.constant 0 : index
    %35 = vector.load %arg4[%c0_17, %c0_18] : memref<8x128xf32, #tpu.memory_space<vmem>>, vector<8x128xf32>
    tpu.vector_store %arg4[%c0_17, %c0_18], %34 {strides = array<i32>} : memref<8x128xf32, #tpu.memory_space<vmem>>, vector<8x128xf32>,
    %c2 = arith.constant 2 : index
    %c0_19 = arith.constant 0 : index
    %c0_20 = arith.constant 0 : index
    %36 = vector.load %arg2[%c2, %c0_19, %c0_20] : memref<4x128x128xbf16, #tpu.memory_space<vmem>>, vector<1x128x128xbf16>
    %37 = vector.shape_cast %36 : vector<1x128x128xbf16> to vector<128x128xbf16>
    %c2_21 = arith.constant 2 : index
    %c0_22 = arith.constant 0 : index
    %c0_23 = arith.constant 0 : index
    %38 = vector.load %arg3[%c2_21, %c0_22, %c0_23] : memref<4x1x128xf32, #tpu.memory_space<vmem>>, vector<1x1x128xf32>
    %39 = vector.shape_cast %38 : vector<1x1x128xf32> to vector<1x128xf32>
    %40 = arith.truncf %34 : vector<8x128xf32> to vector<8x128xbf16>
    %cst_24 = arith.constant dense<0.000000e+00> : vector<8x128xf32>
    %41 = tpu.matmul %40, %37, %cst_24 {dimension_numbers = #tpu.dot_dimension_numbers<[1], [0], [0], [1], [0, 0, 1, 1], [], []>} : vector<8x128xbf16>, vector<128x128xbf16>, vector<8x128xf32> -> vector<8x128xf32>
    %42 = vector.broadcast %39 : vector<1x128xf32> to vector<8x128xf32>
    %43 = arith.addf %41, %42 : vector<8x128xf32>
    %44 = math.tanh %43 : vector<8x128xf32>
    %c3 = arith.constant 3 : index
    %c0_25 = arith.constant 0 : index
    %c0_26 = arith.constant 0 : index
    %45 = vector.load %arg2[%c3, %c0_25, %c0_26] : memref<4x128x128xbf16, #tpu.memory_space<vmem>>, vector<1x128x128xbf16>
    %46 = vector.shape_cast %45 : vector<1x128x128xbf16> to vector<128x128xbf16>
    %c3_27 = arith.constant 3 : index
    %c0_28 = arith.constant 0 : index
    %c0_29 = arith.constant 0 : index
    %47 = vector.load %arg3[%c3_27, %c0_28, %c0_29] : memref<4x1x128xf32, #tpu.memory_space<vmem>>, vector<1x1x128xf32>
    %48 = vector.shape_cast %47 : vector<1x1x128xf32> to vector<1x128xf32>
    %49 = arith.truncf %44 : vector<8x128xf32> to vector<8x128xbf16>
    %cst_30 = arith.constant dense<0.000000e+00> : vector<8x128xf32>
    %50 = tpu.matmul %49, %46, %cst_30 {dimension_numbers = #tpu.dot_dimension_numbers<[1], [0], [0], [1], [0, 0, 1, 1], [], []>} : vector<8x128xbf16>, vector<128x128xbf16>, vector<8x128xf32> -> vector<8x128xf32>
    %51 = vector.broadcast %48 : vector<1x128xf32> to vector<8x128xf32>
    %52 = arith.addf %50, %51 : vector<8x128xf32>
    %c0_31 = arith.constant 0 : index
    %c0_32 = arith.constant 0 : index
    %53 = vector.load %arg5[%c0_31, %c0_32] : memref<8x128xf32, #tpu.memory_space<vmem>>, vector<8x128xf32>
    tpu.vector_store %arg5[%c0_31, %c0_32], %52 {strides = array<i32>} : memref<8x128xf32, #tpu.memory_space<vmem>>, vector<8x128xf32>,
    return
  }
  func.func @transform_0(%arg0: i32) -> (i32, i32) {
    %c0_i32 = arith.constant 0 : i32
    %c0_i32_0 = arith.constant 0 : i32
    return %arg0, %c0_i32 : i32, i32
  }
  func.func @transform_1(%arg0: i32) -> (i32, i32, i32) {
    %c0_i32 = arith.constant 0 : i32
    %c0_i32_0 = arith.constant 0 : i32
    %c0_i32_1 = arith.constant 0 : i32
    %c0_i32_2 = arith.constant 0 : i32
    return %c0_i32, %c0_i32_0, %c0_i32_1 : i32, i32, i32
  }
  func.func @transform_2(%arg0: i32) -> (i32, i32, i32) {
    %c0_i32 = arith.constant 0 : i32
    %c0_i32_0 = arith.constant 0 : i32
    %c0_i32_1 = arith.constant 0 : i32
    %c0_i32_2 = arith.constant 0 : i32
    return %c0_i32, %c0_i32_0, %c0_i32_1 : i32, i32, i32
  }
  func.func @transform_3(%arg0: i32) -> (i32, i32) {
    %c0_i32 = arith.constant 0 : i32
    %c0_i32_0 = arith.constant 0 : i32
    return %arg0, %c0_i32 : i32, i32
  }
  func.func @transform_4(%arg0: i32) -> (i32, i32) {
    %c0_i32 = arith.constant 0 : i32
    %c0_i32_0 = arith.constant 0 : i32
    return %arg0, %c0_i32 : i32, i32
  }
}

</mosaic_0001>

<llo_original>
// kernel: forward.1
$region0: #{forward.1}
  #allocation0 [shape = 'u32[]', space=smem, size = 0x4, offset = 0x4, fixed_abs, tag = 'smem constant byte address 0x4 - core index']
  #allocation1 [shape = 'u32[72,128]{1,0:T(1,128)}', space=vmem, size = 0x9000, scoped, tag = 'internal scratch']
  %s0 = inlined_call_operand.hbm [shape: f32[8,128], index: 0, kind: input, shape index: {}]
  %s1 = inlined_call_operand.hbm [shape: bf16[4,128,128], index: 1, kind: input, shape index: {}]
  %s2 = inlined_call_operand.hbm [shape: f32[4,1,128], index: 2, kind: input, shape index: {}]
  %s3 = inlined_call_operand.hbm [shape: f32[8,128], index: 3, kind: output, shape index: {0}]
  %s4 = inlined_call_operand.hbm [shape: f32[8,128], index: 4, kind: output, shape index: {1}]
  %5 = xla_tuple %s3, %s4
  %s6 = sld [smem:[#allocation0]]
  $region42: #{forward.1} parent=0
    _
  %s8 = ssub.s32 1, %s6
  %s9 = scalar_select 0, %s8, %s6
  $region1: #{forward.1} parent=0
    #allocation2 [shape = 'u8[4096]{0}', space=vmem, size = 0x1000, scoped, tag = 'input window, operand 0, single buffered']
    #allocation3 [shape = 's32[1]{0}', space=sflag, size = 0x4, scoped, tag = 'scoped memory for forward.1']
    #allocation4 [shape = 's32[1]{0}', space=sflag, size = 0x4, scoped, tag = 'scoped memory for forward.1']
    #allocation5 [shape = 'u8[131072]{0}', space=vmem, size = 0x20000, scoped, tag = 'input window, operand 1, single buffered']
    #allocation6 [shape = 's32[1]{0}', space=sflag, size = 0x4, scoped, tag = 'scoped memory for forward.1']
    #allocation7 [shape = 'u8[2048]{0}', space=vmem, size = 0x800, scoped, tag = 'input window, operand 2, single buffered']
    #allocation8 [shape = 'u8[4096]{0}', space=vmem, size = 0x1000, scoped, tag = 'output window, operand 0, single buffered']
    #allocation9 [shape = 'u8[4096]{0}', space=vmem, size = 0x1000, scoped, tag = 'output window, operand 1, single buffered']
    #allocation10 [shape = 's32[1]{0}', space=sflag, size = 0x4, scoped, tag = 'scoped memory for forward.1']
    %10 = vsyncpa [#allocation3], 0
    %11 = vsyncpa [#allocation6], 0
    %12 = vsyncpa [#allocation4], 0
    %13 = vsyncpa [#allocation10], 0
    // Predicated region
    $region2: #{forward.1} parent=1 // pred_check
      _
    $region3: #{forward.1} parent=1 // pred_check_branch
      %15 = sbr.rel (0) target = $region5
    $region4: #{forward.1} parent=1 // pred_region
      %17 = vsyncadd [#allocation3], 0
      %s19 = sshll.u32 %s0, 4
      %s20 = int_to_ptr.hbm [resolvable:$true] %s19
      %s21 = sshll.u32 [#allocation2], 4
      %s22 = int_to_ptr.vmem [resolvable:$true] %s21
      %24 = dma.hbm_to_vmem [thread:$0]  %s20, 128, %s22, [#allocation3]
    $region5: #{forward.1} parent=1 // pred_fallthru
      _
    // Predicated region
    $region6: #{forward.1} parent=1 // pred_check
      _
    $region7: #{forward.1} parent=1 // pred_check_branch
      %26 = sbr.rel (0) target = $region9
    $region8: #{forward.1} parent=1 // pred_region
      %28 = vsyncadd [#allocation6], 0
      %s29 = sshll.u32 %s1, 4
      %s30 = int_to_ptr.hbm [resolvable:$true] %s29
      %s31 = sshll.u32 [#allocation5], 4
      %s32 = int_to_ptr.vmem [resolvable:$true] %s31
      %37 = dma.hbm_to_vmem [thread:$0]  %s30, 4096, %s32, [#allocation6], 64, 64, 4
    $region9: #{forward.1} parent=1 // pred_fallthru
      _
    // Predicated region
    $region10: #{forward.1} parent=1 // pred_check
      _
    $region11: #{forward.1} parent=1 // pred_check_branch
      %39 = sbr.rel (0) target = $region13
    $region12: #{forward.1} parent=1 // pred_region
      %41 = vsyncadd [#allocation6], 0
      %s42 = sshll.u32 %s2, 4
      %s43 = int_to_ptr.hbm [resolvable:$true] %s42
      %s44 = sshll.u32 [#allocation7], 4
      %s45 = int_to_ptr.vmem [resolvable:$true] %s44
      %50 = dma.hbm_to_vmem [thread:$0]  %s43, 64, %s45, [#allocation6], 16, 16, 1
    $region13: #{forward.1} parent=1 // pred_fallthru
      _
    // Predicated region
    $region14: #{forward.1} parent=1 // pred_check
      _
    $region15: #{forward.1} parent=1 // pred_check_branch
      %52 = sbr.rel (0) target = $region17
    $region16: #{forward.1} parent=1 // pred_region
      %54 = dma.done [#allocation3], 128
    $region17: #{forward.1} parent=1 // pred_fallthru
      _
    // Predicated region
    $region18: #{forward.1} parent=1 // pred_check
      _
    $region19: #{forward.1} parent=1 // pred_check_branch
      %56 = sbr.rel (0) target = $region21
    $region20: #{forward.1} parent=1 // pred_region
      %58 = dma.done [#allocation6], 4096
    $region21: #{forward.1} parent=1 // pred_fallthru
      _
    // Predicated region
    $region22: #{forward.1} parent=1 // pred_check
      _
    $region23: #{forward.1} parent=1 // pred_check_branch
      %60 = sbr.rel (0) target = $region25
    $region24: #{forward.1} parent=1 // pred_region
      %62 = dma.done [#allocation6], 64
    $region25: #{forward.1} parent=1 // pred_fallthru
      _
    %v63 = vld [vmem:[#allocation2] sm:$0xff]
    %v64 = vld [vmem:[#allocation5] sm:$0xf]
    %v65 = vld [vmem:[#allocation5 + $0x4] sm:$0xf]
    %v66 = vld [vmem:[#allocation5 + $0x8] sm:$0xf]
    %v67 = vld [vmem:[#allocation5 + $0xc] sm:$0xf]
    %v68 = vld [vmem:[#allocation5 + $0x10] sm:$0xf]
    %v69 = vld [vmem:[#allocation5 + $0x14] sm:$0xf]
    %v70 = vld [vmem:[#allocation5 + $0x18] sm:$0xf]
    %v71 = vld [vmem:[#allocation5 + $0x1c] sm:$0xf]
    %v72 = vld [vmem:[#allocation5 + $0x20] sm:$0xf]
    %v73 = vld [vmem:[#allocation5 + $0x24] sm:$0xf]
    %v74 = vld [vmem:[#allocation5 + $0x28] sm:$0xf]
    %v75 = vld [vmem:[#allocation5 + $0x2c] sm:$0xf]
    %v76 = vld [vmem:[#allocation5 + $0x30] sm:$0xf]
    %v77 = vld [vmem:[#allocation5 + $0x34] sm:$0xf]
    %v78 = vld [vmem:[#allocation5 + $0x38] sm:$0xf]
    %v79 = vld [vmem:[#allocation5 + $0x3c] sm:$0xf]
    %v80 = vld [vmem:[#allocation7] sm:$0x1]
    %v81 = vpack.c.bf16 %v63, %v63
    %v83 = vperm.slane %v80, 0
    %v101 = vunpack.c.l.b16 %v64
    %v102 = vunpack.c.l.b16 %v65
    %v103 = vunpack.c.l.b16 %v66
    %v104 = vunpack.c.l.b16 %v67
    %v105 = vunpack.c.l.b16 %v68
    %v106 = vunpack.c.l.b16 %v69
    %v107 = vunpack.c.l.b16 %v70
    %v108 = vunpack.c.l.b16 %v71
    %v109 = vunpack.c.l.b16 %v72
    %v110 = vunpack.c.l.b16 %v73
    %v111 = vunpack.c.l.b16 %v74
    %v112 = vunpack.c.l.b16 %v75
    %v113 = vunpack.c.l.b16 %v76
    %v114 = vunpack.c.l.b16 %v77
    %v115 = vunpack.c.l.b16 %v78
    %v116 = vunpack.c.l.b16 %v79
    %v117 = vpack.c.b16 %v102, %v101
    %v118 = vpack.c.b16 %v104, %v103
    %v119 = vpack.c.b16 %v106, %v105
    %v120 = vpack.c.b16 %v108, %v107
    %v121 = vpack.c.b16 %v110, %v109
    %v122 = vpack.c.b16 %v112, %v111
    %v123 = vpack.c.b16 %v114, %v113
    %v124 = vpack.c.b16 %v116, %v115
    %133 = vmatpush.bf16.msra.mxu0 %v124
    %134 = vmatpush.bf16.msra.mxu0 %v123
    %135 = vmatpush.bf16.msra.mxu0 %v122
    %136 = vmatpush.bf16.msra.mxu0 %v121
    %137 = vmatpush.bf16.msra.mxu0 %v120
    %138 = vmatpush.bf16.msra.mxu0 %v119
    %139 = vmatpush.bf16.msra.mxu0 %v118
    %140 = vmatpush.bf16.msra.mxu0 %v117
    %141 = vmatmul.bf16.gmra.mxu0 %v81
    %v142 = vpop.f32.mrf.mxu0
    %v143 = vadd.f32 %v83, %v142
    %v144 = vpop.f32.mrf.mxu0
    %145 = vdwg.mxu0
    %v146 = vtanh.pop %v143
    %s147 = scalar_lea.vmem [#allocation5], 64
    %v148 = vld [vmem:[%s147] sm:$0xf]
    %v149 = vld [vmem:[%s147 + $0x4] sm:$0xf]
    %v150 = vld [vmem:[%s147 + $0x8] sm:$0xf]
    %v151 = vld [vmem:[%s147 + $0xc] sm:$0xf]
    %v152 = vld [vmem:[%s147 + $0x10] sm:$0xf]
    %v153 = vld [vmem:[%s147 + $0x14] sm:$0xf]
    %v154 = vld [vmem:[%s147 + $0x18] sm:$0xf]
    %v155 = vld [vmem:[%s147 + $0x1c] sm:$0xf]
    %v156 = vld [vmem:[%s147 + $0x20] sm:$0xf]
    %v157 = vld [vmem:[%s147 + $0x24] sm:$0xf]
    %v158 = vld [vmem:[%s147 + $0x28] sm:$0xf]
    %v159 = vld [vmem:[%s147 + $0x2c] sm:$0xf]
    %v160 = vld [vmem:[%s147 + $0x30] sm:$0xf]
    %v161 = vld [vmem:[%s147 + $0x34] sm:$0xf]
    %v162 = vld [vmem:[%s147 + $0x38] sm:$0xf]
    %v163 = vld [vmem:[%s147 + $0x3c] sm:$0xf]
    %s164 = scalar_lea.vmem [#allocation7], 1
    %v165 = vld [vmem:[%s164] sm:$0x1]
    %v166 = vpack.c.bf16 %v146, %v146
    %v168 = vperm.slane %v165, 0
    %v186 = vunpack.c.l.b16 %v148
    %v187 = vunpack.c.l.b16 %v149
    %v188 = vunpack.c.l.b16 %v150
    %v189 = vunpack.c.l.b16 %v151
    %v190 = vunpack.c.l.b16 %v152
    %v191 = vunpack.c.l.b16 %v153
    %v192 = vunpack.c.l.b16 %v154
    %v193 = vunpack.c.l.b16 %v155
    %v194 = vunpack.c.l.b16 %v156
    %v195 = vunpack.c.l.b16 %v157
    %v196 = vunpack.c.l.b16 %v158
    %v197 = vunpack.c.l.b16 %v159
    %v198 = vunpack.c.l.b16 %v160
    %v199 = vunpack.c.l.b16 %v161
    %v200 = vunpack.c.l.b16 %v162
    %v201 = vunpack.c.l.b16 %v163
    %v202 = vpack.c.b16 %v187, %v186
    %v203 = vpack.c.b16 %v189, %v188
    %v204 = vpack.c.b16 %v191, %v190
    %v205 = vpack.c.b16 %v193, %v192
    %v206 = vpack.c.b16 %v195, %v194
    %v207 = vpack.c.b16 %v197, %v196
    %v208 = vpack.c.b16 %v199, %v198
    %v209 = vpack.c.b16 %v201, %v200
    %218 = vmatpush.bf16.msra.mxu0 %v209
    %219 = vmatpush.bf16.msra.mxu0 %v208
    %220 = vmatpush.bf16.msra.mxu0 %v207
    %221 = vmatpush.bf16.msra.mxu0 %v206
    %222 = vmatpush.bf16.msra.mxu0 %v205
    %223 = vmatpush.bf16.msra.mxu0 %v204
    %224 = vmatpush.bf16.msra.mxu0 %v203
    %225 = vmatpush.bf16.msra.mxu0 %v202
    %226 = vmatmul.bf16.gmra.mxu0 %v166
    %v227 = vpop.f32.mrf.mxu0
    %v228 = vadd.f32 %v168, %v227
    %v229 = vpop.f32.mrf.mxu0
    %230 = vdwg.mxu0
    %v231 = vlaneseq
    %v232 = vand.u32 %v231, 127
    %vm233 = vcmp.lt.s32.totalorder %v232, 8
    %v234 = vsel %vm233, %v228, -1e+30
    %235 = vmax.xlane.f32.xlu0 %v234
    %v236 = vpop.xlane.xlu0 %235
    %v237 = vsub.f32 %v234, %v236
    %v238 = vmul.f32 %v237, 1.442695
    %v239 = vpow.pop %v238
    %v240 = vsel %vm233, %v239, 0.0
    %241 = vadd.xlane.f32.xlu0 %v240
    %v242 = vpop.xlane.xlu0 %241
    %v243 = vrcp.pop %v242
    %v244 = vmul.f32 %v240, %v243
    %245 = vst [vmem:[#allocation8] sm:$0xff] %v244
    %s246 = scalar_lea.vmem [#allocation5], 128
    %v247 = vld [vmem:[%s246] sm:$0xf]
    %v248 = vld [vmem:[%s246 + $0x4] sm:$0xf]
    %v249 = vld [vmem:[%s246 + $0x8] sm:$0xf]
    %v250 = vld [vmem:[%s246 + $0xc] sm:$0xf]
    %v251 = vld [vmem:[%s246 + $0x10] sm:$0xf]
    %v252 = vld [vmem:[%s246 + $0x14] sm:$0xf]
    %v253 = vld [vmem:[%s246 + $0x18] sm:$0xf]
    %v254 = vld [vmem:[%s246 + $0x1c] sm:$0xf]
    %v255 = vld [vmem:[%s246 + $0x20] sm:$0xf]
    %v256 = vld [vmem:[%s246 + $0x24] sm:$0xf]
    %v257 = vld [vmem:[%s246 + $0x28] sm:$0xf]
    %v258 = vld [vmem:[%s246 + $0x2c] sm:$0xf]
    %v259 = vld [vmem:[%s246 + $0x30] sm:$0xf]
    %v260 = vld [vmem:[%s246 + $0x34] sm:$0xf]
    %v261 = vld [vmem:[%s246 + $0x38] sm:$0xf]
    %v262 = vld [vmem:[%s246 + $0x3c] sm:$0xf]
    %s263 = scalar_lea.vmem [#allocation7], 2
    %v264 = vld [vmem:[%s263] sm:$0x1]
    %v265 = vpack.c.bf16 %v244, %v244
    %v267 = vperm.slane %v264, 0
    %v285 = vunpack.c.l.b16 %v247
    %v286 = vunpack.c.l.b16 %v248
    %v287 = vunpack.c.l.b16 %v249
    %v288 = vunpack.c.l.b16 %v250
    %v289 = vunpack.c.l.b16 %v251
    %v290 = vunpack.c.l.b16 %v252
    %v291 = vunpack.c.l.b16 %v253
    %v292 = vunpack.c.l.b16 %v254
    %v293 = vunpack.c.l.b16 %v255
    %v294 = vunpack.c.l.b16 %v256
    %v295 = vunpack.c.l.b16 %v257
    %v296 = vunpack.c.l.b16 %v258
    %v297 = vunpack.c.l.b16 %v259
    %v298 = vunpack.c.l.b16 %v260
    %v299 = vunpack.c.l.b16 %v261
    %v300 = vunpack.c.l.b16 %v262
    %v301 = vpack.c.b16 %v286, %v285
    %v302 = vpack.c.b16 %v288, %v287
    %v303 = vpack.c.b16 %v290, %v289
    %v304 = vpack.c.b16 %v292, %v291
    %v305 = vpack.c.b16 %v294, %v293
    %v306 = vpack.c.b16 %v296, %v295
    %v307 = vpack.c.b16 %v298, %v297
    %v308 = vpack.c.b16 %v300, %v299
    %317 = vmatpush.bf16.msra.mxu0 %v308
    %318 = vmatpush.bf16.msra.mxu0 %v307
    %319 = vmatpush.bf16.msra.mxu0 %v306
    %320 = vmatpush.bf16.msra.mxu0 %v305
    %321 = vmatpush.bf16.msra.mxu0 %v304
    %322 = vmatpush.bf16.msra.mxu0 %v303
    %323 = vmatpush.bf16.msra.mxu0 %v302
    %324 = vmatpush.bf16.msra.mxu0 %v301
    %325 = vmatmul.bf16.gmra.mxu0 %v265
    %v326 = vpop.f32.mrf.mxu0
    %v327 = vadd.f32 %v267, %v326
    %v328 = vpop.f32.mrf.mxu0
    %329 = vdwg.mxu0
    %v330 = vtanh.pop %v327
    %s331 = scalar_lea.vmem [#allocation5], 192
    %v332 = vld [vmem:[%s331] sm:$0xf]
    %v333 = vld [vmem:[%s331 + $0x4] sm:$0xf]
    %v334 = vld [vmem:[%s331 + $0x8] sm:$0xf]
    %v335 = vld [vmem:[%s331 + $0xc] sm:$0xf]
    %v336 = vld [vmem:[%s331 + $0x10] sm:$0xf]
    %v337 = vld [vmem:[%s331 + $0x14] sm:$0xf]
    %v338 = vld [vmem:[%s331 + $0x18] sm:$0xf]
    %v339 = vld [vmem:[%s331 + $0x1c] sm:$0xf]
    %v340 = vld [vmem:[%s331 + $0x20] sm:$0xf]
    %v341 = vld [vmem:[%s331 + $0x24] sm:$0xf]
    %v342 = vld [vmem:[%s331 + $0x28] sm:$0xf]
    %v343 = vld [vmem:[%s331 + $0x2c] sm:$0xf]
    %v344 = vld [vmem:[%s331 + $0x30] sm:$0xf]
    %v345 = vld [vmem:[%s331 + $0x34] sm:$0xf]
    %v346 = vld [vmem:[%s331 + $0x38] sm:$0xf]
    %v347 = vld [vmem:[%s331 + $0x3c] sm:$0xf]
    %s348 = scalar_lea.vmem [#allocation7], 3
    %v349 = vld [vmem:[%s348] sm:$0x1]
    %v350 = vpack.c.bf16 %v330, %v330
    %v352 = vperm.slane %v349, 0
    %v370 = vunpack.c.l.b16 %v332
    %v371 = vunpack.c.l.b16 %v333
    %v372 = vunpack.c.l.b16 %v334
    %v373 = vunpack.c.l.b16 %v335
    %v374 = vunpack.c.l.b16 %v336
    %v375 = vunpack.c.l.b16 %v337
    %v376 = vunpack.c.l.b16 %v338
    %v377 = vunpack.c.l.b16 %v339
    %v378 = vunpack.c.l.b16 %v340
    %v379 = vunpack.c.l.b16 %v341
    %v380 = vunpack.c.l.b16 %v342
    %v381 = vunpack.c.l.b16 %v343
    %v382 = vunpack.c.l.b16 %v344
    %v383 = vunpack.c.l.b16 %v345
    %v384 = vunpack.c.l.b16 %v346
    %v385 = vunpack.c.l.b16 %v347
    %v386 = vpack.c.b16 %v371, %v370
    %v387 = vpack.c.b16 %v373, %v372
    %v388 = vpack.c.b16 %v375, %v374
    %v389 = vpack.c.b16 %v377, %v376
    %v390 = vpack.c.b16 %v379, %v378
    %v391 = vpack.c.b16 %v381, %v380
    %v392 = vpack.c.b16 %v383, %v382
    %v393 = vpack.c.b16 %v385, %v384
    %402 = vmatpush.bf16.msra.mxu0 %v393
    %403 = vmatpush.bf16.msra.mxu0 %v392
    %404 = vmatpush.bf16.msra.mxu0 %v391
    %405 = vmatpush.bf16.msra.mxu0 %v390
    %406 = vmatpush.bf16.msra.mxu0 %v389
    %407 = vmatpush.bf16.msra.mxu0 %v388
    %408 = vmatpush.bf16.msra.mxu0 %v387
    %409 = vmatpush.bf16.msra.mxu0 %v386
    %410 = vmatmul.bf16.gmra.mxu0 %v350
    %v411 = vpop.f32.mrf.mxu0
    %v412 = vadd.f32 %v352, %v411
    %v413 = vpop.f32.mrf.mxu0
    %414 = vdwg.mxu0
    %415 = vst [vmem:[#allocation9] sm:$0xff] %v412
    // Predicated region
    $region26: #{forward.1} parent=1 // pred_check
      _
    $region27: #{forward.1} parent=1 // pred_check_branch
      %417 = sbr.rel (0) target = $region29
    $region28: #{forward.1} parent=1 // pred_region
      %419 = vsyncadd [#allocation4], 0
      %s421 = sshll.u32 [#allocation8], 4
      %s422 = int_to_ptr.vmem [resolvable:$true] %s421
      %s423 = sshll.u32 %s3, 4
      %s424 = int_to_ptr.hbm [resolvable:$true] %s423
      %426 = dma.vmem_to_hbm [thread:$0]  %s422, 128, %s424, [#allocation4]
    $region29: #{forward.1} parent=1 // pred_fallthru
      _
    // Predicated region
    $region30: #{forward.1} parent=1 // pred_check
      _
    $region31: #{forward.1} parent=1 // pred_check_branch
      %428 = sbr.rel (0) target = $region33
    $region32: #{forward.1} parent=1 // pred_region
      %430 = vsyncadd [#allocation10], 0
      %s432 = sshll.u32 [#allocation9], 4
      %s433 = int_to_ptr.vmem [resolvable:$true] %s432
      %s434 = sshll.u32 %s4, 4
      %s435 = int_to_ptr.hbm [resolvable:$true] %s434
      %437 = dma.vmem_to_hbm [thread:$0]  %s433, 128, %s435, [#allocation10]
    $region33: #{forward.1} parent=1 // pred_fallthru
      _
    // Predicated region
    $region34: #{forward.1} parent=1 // pred_check
      _
    $region35: #{forward.1} parent=1 // pred_check_branch
      %439 = sbr.rel (0) target = $region37
    $region36: #{forward.1} parent=1 // pred_region
      %441 = dma.done [#allocation4], 128
    $region37: #{forward.1} parent=1 // pred_fallthru
      _
    // Predicated region
    $region38: #{forward.1} parent=1 // pred_check
      _
    $region39: #{forward.1} parent=1 // pred_check_branch
      %443 = sbr.rel (0) target = $region41
    $region40: #{forward.1} parent=1 // pred_region
      %445 = dma.done [#allocation10], 128
    $region41: #{forward.1} parent=1 // pred_fallthru
      _
    %446 = vsyncpa [#allocation3], 1
    %447 = vsyncpa [#allocation6], 1
    %448 = vsyncpa [#allocation4], 1
    %449 = vsyncpa [#allocation10], 1

</llo_original>
